<compile_context>
chip_gen: v7x
topology: tpu7x:2x2x1
jax: 0.10.0
libtpu: 0.0.40
codegen_flags: <defaults>
</compile_context>

<pallas_src>
import jax
import jax.numpy as jnp
from jax.experimental import pallas as pl
from jax.experimental.pallas import tpu as pltpu


def _round_up(a: int, b: int) -> int:
    return ((a + b - 1) // b) * b


def _se_kernel(x_ref, w1_ref, w2_ref, o_ref):
    # x_ref : (TM, G*C)   packed input rows (G original rows per packed row)
    # w1_ref: (G*C, G*H)  block-diagonal first Linear weight (transposed)
    # w2_ref: (G*H, G*C)  block-diagonal second Linear weight (transposed)
    x = x_ref[...]                                              # native dtype -> MXU
    h = jnp.dot(x, w1_ref[...], preferred_element_type=jnp.float32)
    h = jnp.maximum(h, 0.0)                                     # ReLU
    y = jnp.dot(h.astype(w2_ref.dtype), w2_ref[...],
                preferred_element_type=jnp.float32)
    y = jax.nn.sigmoid(y)                                       # Sigmoid gate (f32, EUP)
    o_ref[...] = (x * y.astype(x.dtype)).astype(o_ref.dtype)    # x * y


def se_layer(x, w1, w2, *, tile_m=1024, pack_g=None):
    """SELayer forward:  out = x * sigmoid(relu(x @ w1) @ w2).

    x  : (..., C)   channel-last
    w1 : (C, H)     first Linear weight, pre-transposed (PyTorch stores (H, C))
    w2 : (H, C)     second Linear weight, pre-transposed (PyTorch stores (C, H))
    """
    orig_shape = x.shape
    C = orig_shape[-1]
    H = w1.shape[1]
    assert w1.shape == (C, H) and w2.shape == (H, C)

    x2d = x.reshape(-1, C)
    M = x2d.shape[0]

    # ---- lane-dense packing: G original rows -> one packed row of width G*C ----
    if pack_g is None:
        G = max(1, -(-128 // C)) if C < 128 else 1
    else:
        G = max(1, int(pack_g))
    L = G * C                        # packed lane width (G=4, C=32 -> 128 lanes)
    GH = G * H

    # Block-diagonal weights so the packed matmul is mathematically unchanged.
    if G > 1:
        eye = jnp.eye(G, dtype=w1.dtype)
        w1_p = jnp.kron(eye, w1)                       # (G*C, G*H)
        w2_p = jnp.kron(eye.astype(w2.dtype), w2)      # (G*H, G*C)
    else:
        w1_p, w2_p = w1, w2

    itemsize = jnp.dtype(x.dtype).itemsize
    sub = 8 if itemsize >= 4 else (16 if itemsize == 2 else 32)   # sublane granularity

    # Only pad when the row count doesn't pack evenly (zero rows gate to zero).
    pad_rows = (-M) % G
    m_total = M + pad_rows
    if pad_rows:
        x2d = jnp.pad(x2d, ((0, pad_rows), (0, 0)))
    mp = m_total // G                                  # number of packed rows
    x_pack = x2d.reshape(mp, L)                        # free row-major reshape

    # Row-tile size: large, sublane-aligned, clamped for small inputs.
    tm = max(sub, min(_round_up(tile_m, sub), _round_up(mp, sub)))
    grid = (pl.cdiv(mp, tm),)                          # ragged edge handled by Pallas

    # VMEM budget: double-buffered in/out tiles + f32 intermediates + weights.
    vmem_bytes = int(
        2 * 2 * tm * L * itemsize                      # x / out tiles, double buffered
        + tm * (GH + L) * 4                            # f32 h and gate intermediates
        + w1_p.size * jnp.dtype(w1_p.dtype).itemsize
        + w2_p.size * jnp.dtype(w2_p.dtype).itemsize
        + (2 << 20))
    vmem_bytes = min(max(vmem_bytes, 16 << 20), 48 << 20)

    cost = pl.CostEstimate(
        flops=4 * m_total * C * H,                     # two matmuls, 2*M*C*H flops each
        transcendentals=m_total * C,                   # sigmoid
        bytes_accessed=2 * m_total * C * itemsize,     # read x + write out (mem-bound)
    )

    out_pack = pl.pallas_call(
        _se_kernel,
        out_shape=jax.ShapeDtypeStruct((mp, L), x.dtype),
        grid_spec=pltpu.PrefetchScalarGridSpec(
            num_scalar_prefetch=0,
            grid=grid,
            in_specs=[
                pl.BlockSpec((tm, L), lambda i: (i, 0)),   # streamed x rows
                pl.BlockSpec((L, GH), lambda i: (0, 0)),   # W1 block-diag (resident)
                pl.BlockSpec((GH, L), lambda i: (0, 0)),   # W2 block-diag (resident)
            ],
            out_specs=pl.BlockSpec((tm, L), lambda i: (i, 0)),
        ),
        compiler_params=pltpu.CompilerParams(
            dimension_semantics=("parallel",),
            vmem_limit_bytes=vmem_bytes,
        ),
        cost_estimate=cost,
    )(x_pack, w1_p, w2_p)

    out = out_pack.reshape(m_total, C)
    if pad_rows:
        out = out[:M]
    return out.reshape(orig_shape)


def _reference(x, w1, w2):
    h = jnp.maximum(x @ w1, 0.0)
    y = jax.nn.sigmoid(h @ w2)
    return x * y


if __name__ == "__main__":
    # Small shapes consistent with the module: channel=32, reduction=16 -> hidden=2.
    C, R = 32, 16
    H = C // R

    key = jax.random.PRNGKey(0)
    kx1, kx2, k1, k2 = jax.random.split(key, 4)

    # PyTorch Linear stores (out, in); we keep the transposed (in, out) layout.
    w1 = jax.random.normal(k1, (C, H), dtype=jnp.float32) * (1.0 / C ** 0.5)
    w2 = jax.random.normal(k2, (H, C), dtype=jnp.float32) * (1.0 / H ** 0.5)

    se_fn = jax.jit(se_layer)

    # Case 1: rows divide the packing evenly (no pad path, zero wrapper copies).
    x_a = jax.random.normal(kx1, (2, 8, C), dtype=jnp.float32)
    out_a = jax.block_until_ready(se_fn(x_a, w1, w2))
    assert out_a.shape == x_a.shape
    assert jnp.allclose(out_a, _reference(x_a, w1, w2), atol=1e-5, rtol=1e-5), \
        "mismatch vs reference (case 1)"

    # Case 2: odd row count -> exercises the remainder-pad / crop path.
    x_b = jax.random.normal(kx2, (3, 5, C), dtype=jnp.float32)
    out_b = jax.block_until_ready(se_fn(x_b, w1, w2))
    assert out_b.shape == x_b.shape
    assert jnp.allclose(out_b, _reference(x_b, w1, w2), atol=1e-5, rtol=1e-5), \
        "mismatch vs reference (case 2)"

    print("KERNEL_OK")
</pallas_src>

<mosaic_0001>
module attributes {stable_mosaic.version = 11 : i64} {
  func.func @_se_kernel(%arg0: i32, %arg1: memref<8x128xf32, #tpu.memory_space<vmem>>, %arg2: memref<128x8xf32, #tpu.memory_space<vmem>>, %arg3: memref<8x128xf32, #tpu.memory_space<vmem>>, %arg4: memref<8x128xf32, #tpu.memory_space<vmem>>) attributes {dimension_semantics = [#tpu.dimension_semantics<parallel>], iteration_bounds = array<i64: 1>, scalar_prefetch = 0 : i64, scratch_operands = 0 : i64, tpu.core_type = #tpu.core_type<tc>, window_params = [{transform_indices = @transform_0, window_bounds = array<i64: 8, 128>}, {pipeline_mode = #tpu.pipeline_mode<synchronous>, transform_indices = @transform_1, window_bounds = array<i64: 128, 8>}, {pipeline_mode = #tpu.pipeline_mode<synchronous>, transform_indices = @transform_2, window_bounds = array<i64: 8, 128>}, {transform_indices = @transform_3, window_bounds = array<i64: 8, 128>}]} {
    %c0 = arith.constant 0 : index
    %c0_0 = arith.constant 0 : index
    %0 = vector.load %arg1[%c0, %c0_0] : memref<8x128xf32, #tpu.memory_space<vmem>>, vector<8x128xf32>
    %c0_1 = arith.constant 0 : index
    %c0_2 = arith.constant 0 : index
    %1 = vector.load %arg2[%c0_1, %c0_2] : memref<128x8xf32, #tpu.memory_space<vmem>>, vector<128x8xf32>
    %cst = arith.constant dense<0.000000e+00> : vector<8x8xf32>
    %2 = tpu.matmul %0, %1, %cst {dimension_numbers = #tpu.dot_dimension_numbers<[1], [0], [0], [1], [0, 0, 1, 1], [], []>} : vector<8x128xf32>, vector<128x8xf32>, vector<8x8xf32> -> vector<8x8xf32>
    %cst_3 = arith.constant 0.000000e+00 : f32
    %3 = vector.broadcast %cst_3 : f32 to vector<8x8xf32>
    %4 = arith.maximumf %2, %3 : vector<8x8xf32>
    %c0_4 = arith.constant 0 : index
    %c0_5 = arith.constant 0 : index
    %5 = vector.load %arg3[%c0_4, %c0_5] : memref<8x128xf32, #tpu.memory_space<vmem>>, vector<8x128xf32>
    %cst_6 = arith.constant dense<0.000000e+00> : vector<8x128xf32>
    %6 = tpu.matmul %4, %5, %cst_6 {dimension_numbers = #tpu.dot_dimension_numbers<[1], [0], [0], [1], [0, 0, 1, 1], [], []>} : vector<8x8xf32>, vector<8x128xf32>, vector<8x128xf32> -> vector<8x128xf32>
    %7 = arith.negf %6 : vector<8x128xf32>
    %8 = math.exp %7 : vector<8x128xf32>
    %cst_7 = arith.constant 1.000000e+00 : f32
    %9 = vector.broadcast %cst_7 : f32 to vector<8x128xf32>
    %10 = arith.addf %9, %8 : vector<8x128xf32>
    %11 = arith.divf %9, %10 : vector<8x128xf32>
    %12 = arith.mulf %0, %11 : vector<8x128xf32>
    %c0_8 = arith.constant 0 : index
    %c0_9 = arith.constant 0 : index
    %13 = vector.load %arg4[%c0_8, %c0_9] : memref<8x128xf32, #tpu.memory_space<vmem>>, vector<8x128xf32>
    tpu.vector_store %arg4[%c0_8, %c0_9], %12 {strides = array<i32>} : memref<8x128xf32, #tpu.memory_space<vmem>>, vector<8x128xf32>,
    return
  }
  func.func @transform_0(%arg0: i32) -> (i32, i32) {
    %c0_i32 = arith.constant 0 : i32
    %c0_i32_0 = arith.constant 0 : i32
    return %arg0, %c0_i32 : i32, i32
  }
  func.func @transform_1(%arg0: i32) -> (i32, i32) {
    %c0_i32 = arith.constant 0 : i32
    %c0_i32_0 = arith.constant 0 : i32
    %c0_i32_1 = arith.constant 0 : i32
    return %c0_i32, %c0_i32_0 : i32, i32
  }
  func.func @transform_2(%arg0: i32) -> (i32, i32) {
    %c0_i32 = arith.constant 0 : i32
    %c0_i32_0 = arith.constant 0 : i32
    %c0_i32_1 = arith.constant 0 : i32
    return %c0_i32, %c0_i32_0 : i32, i32
  }
  func.func @transform_3(%arg0: i32) -> (i32, i32) {
    %c0_i32 = arith.constant 0 : i32
    %c0_i32_0 = arith.constant 0 : i32
    return %arg0, %c0_i32 : i32, i32
  }
}

</mosaic_0001>

<llo_original>
// kernel: se_layer.1
$region0: #{se_layer.1}
  #allocation0 [shape = 'u32[]', space=smem, size = 0x4, offset = 0x4, fixed_abs, tag = 'smem constant byte address 0x4 - core index']
  #allocation1 [shape = 'u32[144,128]{1,0:T(1,128)}', space=vmem, size = 0x12000, scoped, tag = 'internal scratch']
  %s0 = inlined_call_operand.vmem [shape: f32[4,128], index: 0, kind: input, shape index: {}]
  %s1 = inlined_call_operand.vmem [shape: f32[128,8], index: 1, kind: input, shape index: {}]
  %s2 = inlined_call_operand.vmem [shape: f32[8,128], index: 2, kind: input, shape index: {}]
  %s3 = inlined_call_operand.vmem [shape: f32[4,128], index: 3, kind: output, shape index: {}]
  %s4 = sld [smem:[#allocation0]]
  $region52: #{se_layer.1} parent=0
    _
  %s6 = ssub.s32 1, %s4
  %s7 = scalar_select 0, %s6, %s4
  $region1: #{se_layer.1} parent=0
    #allocation2 [shape = 'u8[4096]{0}', space=vmem, size = 0x1000, scoped, tag = 'output window, operand 0, single buffered']
    // Predicated region
    $region2: #{se_layer.1} parent=1 // pred_check
      _
    $region3: #{se_layer.1} parent=1 // pred_check_branch
      %9 = sbr.rel (0) target = $region5
    $region4: #{se_layer.1} parent=1 // pred_region
      _
    $region5: #{se_layer.1} parent=1 // pred_fallthru
      _
    // Predicated region
    $region6: #{se_layer.1} parent=1 // pred_check
      _
    $region7: #{se_layer.1} parent=1 // pred_check_branch
      %11 = sbr.rel (0) target = $region9
    $region8: #{se_layer.1} parent=1 // pred_region
      _
    $region9: #{se_layer.1} parent=1 // pred_fallthru
      _
    // Predicated region
    $region10: #{se_layer.1} parent=1 // pred_check
      _
    $region11: #{se_layer.1} parent=1 // pred_check_branch
      %13 = sbr.rel (0) target = $region13
    $region12: #{se_layer.1} parent=1 // pred_region
      _
    $region13: #{se_layer.1} parent=1 // pred_fallthru
      _
    %v14 = vld [vmem:[%s0] sm:$0xff]
    %v15 = vld [vmem:[%s1] sm:$0xff]
    %v16 = vld [vmem:[%s1 + $0x8] sm:$0xff]
    %v17 = vld [vmem:[%s1 + $0x10] sm:$0xff]
    %v18 = vld [vmem:[%s1 + $0x18] sm:$0xff]
    %v19 = vld [vmem:[%s1 + $0x20] sm:$0xff]
    %v20 = vld [vmem:[%s1 + $0x28] sm:$0xff]
    %v21 = vld [vmem:[%s1 + $0x30] sm:$0xff]
    %v22 = vld [vmem:[%s1 + $0x38] sm:$0xff]
    %v23 = vld [vmem:[%s1 + $0x40] sm:$0xff]
    %v24 = vld [vmem:[%s1 + $0x48] sm:$0xff]
    %v25 = vld [vmem:[%s1 + $0x50] sm:$0xff]
    %v26 = vld [vmem:[%s1 + $0x58] sm:$0xff]
    %v27 = vld [vmem:[%s1 + $0x60] sm:$0xff]
    %v28 = vld [vmem:[%s1 + $0x68] sm:$0xff]
    %v29 = vld [vmem:[%s1 + $0x70] sm:$0xff]
    %v30 = vld [vmem:[%s1 + $0x78] sm:$0xff]
    %31 = vmatprep.subr.mxu0 0.0
    %32 = vmatpush1.msra.mxu0 %v15
    %33 = vmatprep.subr.mxu0 0.0
    %34 = vmatpush1.msra.mxu0 %v16
    %35 = vmatprep.subr.mxu0 0.0
    %36 = vmatpush1.msra.mxu0 %v17
    %37 = vmatprep.subr.mxu0 0.0
    %38 = vmatpush1.msra.mxu0 %v18
    %39 = vmatprep.subr.mxu0 0.0
    %40 = vmatpush1.msra.mxu0 %v19
    %41 = vmatprep.subr.mxu0 0.0
    %42 = vmatpush1.msra.mxu0 %v20
    %43 = vmatprep.subr.mxu0 0.0
    %44 = vmatpush1.msra.mxu0 %v21
    %45 = vmatprep.subr.mxu0 0.0
    %46 = vmatpush1.msra.mxu0 %v22
    %47 = vmatprep.subr.mxu0 0.0
    %48 = vmatpush1.msra.mxu0 %v23
    %49 = vmatprep.subr.mxu0 0.0
    %50 = vmatpush1.msra.mxu0 %v24
    %51 = vmatprep.subr.mxu0 0.0
    %52 = vmatpush1.msra.mxu0 %v25
    %53 = vmatprep.subr.mxu0 0.0
    %54 = vmatpush1.msra.mxu0 %v26
    %55 = vmatprep.subr.mxu0 0.0
    %56 = vmatpush1.msra.mxu0 %v27
    %57 = vmatprep.subr.mxu0 0.0
    %58 = vmatpush1.msra.mxu0 %v28
    %59 = vmatprep.subr.mxu0 0.0
    %60 = vmatpush1.msra.mxu0 %v29
    %61 = vmatprep.subr.mxu0 0.0
    %62 = vmatpush1.msra.mxu0 %v30
    %63 = vmatprep.subr.mxu0 0.0
    %64 = vmatpush1.msra.mxu0 0.0
    %65 = vmatprep.subr.mxu0 0.0
    %66 = vmatpush1.msra.mxu0 0.0
    %67 = vmatprep.subr.mxu0 0.0
    %68 = vmatpush1.msra.mxu0 0.0
    %69 = vmatprep.subr.mxu0 0.0
    %70 = vmatpush1.msra.mxu0 0.0
    %71 = vmatprep.subr.mxu0 0.0
    %72 = vmatpush1.msra.mxu0 0.0
    %73 = vmatprep.subr.mxu0 0.0
    %74 = vmatpush1.msra.mxu0 0.0
    %75 = vmatprep.subr.mxu0 0.0
    %76 = vmatpush1.msra.mxu0 0.0
    %77 = vmatprep.subr.mxu0 0.0
    %78 = vmatpush1.msra.mxu0 0.0
    %79 = vmatprep.subr.mxu0 0.0
    %80 = vmatpush1.msra.mxu0 0.0
    %81 = vmatprep.subr.mxu0 0.0
    %82 = vmatpush1.msra.mxu0 0.0
    %83 = vmatprep.subr.mxu0 0.0
    %84 = vmatpush1.msra.mxu0 0.0
    %85 = vmatprep.subr.mxu0 0.0
    %86 = vmatpush1.msra.mxu0 0.0
    %87 = vmatprep.subr.mxu0 0.0
    %88 = vmatpush1.msra.mxu0 0.0
    %89 = vmatprep.subr.mxu0 0.0
    %90 = vmatpush1.msra.mxu0 0.0
    %91 = vmatprep.subr.mxu0 0.0
    %92 = vmatpush1.msra.mxu0 0.0
    %93 = vmatprep.subr.mxu0 0.0
    %94 = vmatpush1.msra.mxu0 0.0
    %95 = vmatprep.mubr.f32.mxu0 0.0
    %96 = vmatmul.mubr.f32.gmra.mrb[0].mxu0 %v14
    %v97 = vpop.f32.mrb[0].mxu0
    %v98 = vadd.f32 0.0, %v97
    %v99 = vpop.f32.mrb[0].mxu0
    %100 = vdwg.mxu0
    %v101 = vmax.f32 %v98, 0.0
    %v102 = vld [vmem:[%s2] sm:$0xff]
    %vm103 = vcmask 64512
    %v105 = vsel %vm103, %v101, 0
    %107 = vmatprep.subr.mxu0 0.0
    %108 = vmatpush1.msra.mxu0 %v102
    %109 = vmatprep.subr.mxu0 0.0
    %110 = vmatpush1.msra.mxu0 0.0
    %111 = vmatprep.subr.mxu0 0.0
    %112 = vmatpush1.msra.mxu0 0.0
    %113 = vmatprep.subr.mxu0 0.0
    %114 = vmatpush1.msra.mxu0 0.0
    %115 = vmatprep.subr.mxu0 0.0
    %116 = vmatpush1.msra.mxu0 0.0
    %117 = vmatprep.subr.mxu0 0.0
    %118 = vmatpush1.msra.mxu0 0.0
    %119 = vmatprep.subr.mxu0 0.0
    %120 = vmatpush1.msra.mxu0 0.0
    %121 = vmatprep.subr.mxu0 0.0
    %122 = vmatpush1.msra.mxu0 0.0
    %123 = vmatprep.subr.mxu0 0.0
    %124 = vmatpush1.msra.mxu0 0.0
    %125 = vmatprep.subr.mxu0 0.0
    %126 = vmatpush1.msra.mxu0 0.0
    %127 = vmatprep.subr.mxu0 0.0
    %128 = vmatpush1.msra.mxu0 0.0
    %129 = vmatprep.subr.mxu0 0.0
    %130 = vmatpush1.msra.mxu0 0.0
    %131 = vmatprep.subr.mxu0 0.0
    %132 = vmatpush1.msra.mxu0 0.0
    %133 = vmatprep.subr.mxu0 0.0
    %134 = vmatpush1.msra.mxu0 0.0
    %135 = vmatprep.subr.mxu0 0.0
    %136 = vmatpush1.msra.mxu0 0.0
    %137 = vmatprep.subr.mxu0 0.0
    %138 = vmatpush1.msra.mxu0 0.0
    %139 = vmatprep.subr.mxu0 0.0
    %140 = vmatpush1.msra.mxu0 0.0
    %141 = vmatprep.subr.mxu0 0.0
    %142 = vmatpush1.msra.mxu0 0.0
    %143 = vmatprep.subr.mxu0 0.0
    %144 = vmatpush1.msra.mxu0 0.0
    %145 = vmatprep.subr.mxu0 0.0
    %146 = vmatpush1.msra.mxu0 0.0
    %147 = vmatprep.subr.mxu0 0.0
    %148 = vmatpush1.msra.mxu0 0.0
    %149 = vmatprep.subr.mxu0 0.0
    %150 = vmatpush1.msra.mxu0 0.0
    %151 = vmatprep.subr.mxu0 0.0
    %152 = vmatpush1.msra.mxu0 0.0
    %153 = vmatprep.subr.mxu0 0.0
    %154 = vmatpush1.msra.mxu0 0.0
    %155 = vmatprep.subr.mxu0 0.0
    %156 = vmatpush1.msra.mxu0 0.0
    %157 = vmatprep.subr.mxu0 0.0
    %158 = vmatpush1.msra.mxu0 0.0
    %159 = vmatprep.subr.mxu0 0.0
    %160 = vmatpush1.msra.mxu0 0.0
    %161 = vmatprep.subr.mxu0 0.0
    %162 = vmatpush1.msra.mxu0 0.0
    %163 = vmatprep.subr.mxu0 0.0
    %164 = vmatpush1.msra.mxu0 0.0
    %165 = vmatprep.subr.mxu0 0.0
    %166 = vmatpush1.msra.mxu0 0.0
    %167 = vmatprep.subr.mxu0 0.0
    %168 = vmatpush1.msra.mxu0 0.0
    %169 = vmatprep.subr.mxu0 0.0
    %170 = vmatpush1.msra.mxu0 0.0
    %171 = vmatprep.mubr.f32.mxu0 0.0
    %172 = vmatmul.mubr.f32.gmra.mrb[0].mxu0 %v105
    %v173 = vpop.f32.mrb[0].mxu0
    %v174 = vadd.f32 0.0, %v173
    %v175 = vpop.f32.mrb[0].mxu0
    %176 = vdwg.mxu0
    %v177 = vxor.u32 %v174, 2147483648
    %v178 = vmul.f32 %v177, 1.442695
    %v179 = vpow.pop %v178
    %v180 = vadd.f32 %v179, 1.0
    %v181 = vrcp.pop %v180
    %v182 = vmul.f32 1.0, %v181
    %v183 = vmul.f32 %v14, %v182
    %184 = vst [vmem:[#allocation2] sm:$0xff] %v183
    // Predicated region
    $region14: #{se_layer.1} parent=1 // pred_check
      _
    $region15: #{se_layer.1} parent=1 // pred_check_branch
      %186 = sbr.rel (0) target = $region17
    $region16: #{se_layer.1} parent=1 // pred_region
      // Predicated region
      $region18: #{se_layer.1} parent=16 // pred_check
        _
      $region19: #{se_layer.1} parent=16 // pred_check_branch
        %188 = sbr.rel (0) target = $region21
      $region20: #{se_layer.1} parent=16 // pred_region
        // Predicated region
        $region22: #{se_layer.1} parent=20 // pred_check
          _
        $region23: #{se_layer.1} parent=20 // pred_check_branch
          %190 = sbr.rel target = $region25
        $region24: #{se_layer.1} parent=20 // pred_region
          // Predicated region
          $region37: #{se_layer.1} parent=24 // pred_check
            _
          $region38: #{se_layer.1} parent=24 // pred_check_branch
            %205 = sbr.rel (0) target = $region40
          $region39: #{se_layer.1} parent=24 // pred_region
            loop: start=0, step=1, limit=1
            $region41: #{se_layer.1} parent=39 // loop_pre_header
              _
            $region42: #{se_layer.1} parent=39 // loop_header
              %s208 = sphi 0, %s212
              %p209 = scmp.ge.s32.totalorder %s208, 1
              %s213 = sphi [#allocation2], [#allocation2]
              %s214 = sphi %s3, %s3
            $region43: #{se_layer.1} parent=39 // loop_header_branch
              %211 = sbr.rel (%p209) target = $region47
            $region44: #{se_layer.1} parent=39 // loop_body
              %v215 = vld [vmem:[%s213] sm:$0xf]
              %216 = vst [vmem:[%s214] sm:$0xf] %v215
            $region45: #{se_layer.1} parent=39 // loop_footer
              %s212 = sadd.s32 1, %s208
            $region46: #{se_layer.1} parent=39 // loop_footer_branch
              %207 = sbr.rel target = $region42
            $region47: #{se_layer.1} parent=39 // loop_exit
              _
          $region40: #{se_layer.1} parent=24 // pred_fallthru
            _
        $region25: #{se_layer.1} parent=20 // pred_fallthru
          _
        // Predicated region
        $region26: #{se_layer.1} parent=20 // pred_check
          _
        $region27: #{se_layer.1} parent=20 // pred_check_branch
          %192 = sbr.rel (0) target = $region29
        $region28: #{se_layer.1} parent=20 // pred_region
          loop: start=0, step=1, limit=1
          $region30: #{se_layer.1} parent=28 // loop_pre_header
            _
          $region31: #{se_layer.1} parent=28 // loop_header
            %s195 = sphi 0, %s199
            %p196 = scmp.ge.s32.totalorder %s195, 1
            %s200 = sphi [#allocation2], [#allocation2]
            %s201 = sphi %s3, %s3
          $region32: #{se_layer.1} parent=28 // loop_header_branch
            %198 = sbr.rel (%p196) target = $region36
          $region33: #{se_layer.1} parent=28 // loop_body
            %v202 = vld [vmem:[%s200] sm:$0xf]
            %203 = vst [vmem:[%s201] sm:$0xf] %v202
          $region34: #{se_layer.1} parent=28 // loop_footer
            %s199 = sadd.s32 1, %s195
          $region35: #{se_layer.1} parent=28 // loop_footer_branch
            %194 = sbr.rel target = $region31
          $region36: #{se_layer.1} parent=28 // loop_exit
            _
        $region29: #{se_layer.1} parent=20 // pred_fallthru
          _
      $region21: #{se_layer.1} parent=16 // pred_fallthru
        _
      %217 = vnop
    $region17: #{se_layer.1} parent=1 // pred_fallthru
      _
    // Predicated region
    $region48: #{se_layer.1} parent=1 // pred_check
      _
    $region49: #{se_layer.1} parent=1 // pred_check_branch
      %219 = sbr.rel (0) target = $region51
    $region50: #{se_layer.1} parent=1 // pred_region
      _
    $region51: #{se_layer.1} parent=1 // pred_fallthru
      _

</llo_original>
